<compile_context>
chip_gen: v7x
topology: tpu7x:2x2x1
jax: 0.10.0
libtpu: 0.0.40
codegen_flags: <defaults>
</compile_context>

<pallas_src>
import functools

import jax
import jax.numpy as jnp
from jax.experimental import pallas as pl
from jax.experimental.pallas import tpu as pltpu


def _round_up(x, n):
    return ((x + n - 1) // n) * n


def _amsoftmax_kernel(feat_ref, centers_ref, label_ref, logits_ref, margin_ref,
                      ncent_ref, *, s, m, block_c, matmul_dtype, precision):
    """One (tb x tc) tile of logits / margin_logits.

    Grid = (C_tiles, B_tiles): batch is the inner axis, so the centers tile
    for a given C block stays resident in VMEM (Pallas skips the re-DMA when
    the block index is unchanged) and its normalization is done once per
    C block into the `ncent_ref` scratch.
    """
    i = pl.program_id(0)   # C-tile index (outer, "parallel")
    j = pl.program_id(1)   # B-tile index (inner, "arbitrary")

    # Normalize this centers tile once per C-tile; reused across all B-tiles.
    @pl.when(j == 0)
    def _():
        cent = centers_ref[...].astype(jnp.float32)                       # (tc, Dp)
        inv_c = jax.lax.rsqrt(jnp.sum(cent * cent, axis=-1, keepdims=True))
        ncent_ref[...] = (cent * inv_c).astype(matmul_dtype)

    feat = feat_ref[...]                                                  # (tb, Dp)
    feat_f32 = feat.astype(jnp.float32)
    # Feat normalization folded into a post-matmul row scale (EUP rsqrt).
    inv_feat = jax.lax.rsqrt(jnp.sum(feat_f32 * feat_f32, axis=-1, keepdims=True))

    # MXU matmul, contracting the LAST dim of both operands (no explicit .T).
    # (Verified intent: avoids an XLU transpose in front of every MXU push.)
    raw = jax.lax.dot_general(
        feat.astype(matmul_dtype), ncent_ref[...],
        dimension_numbers=(((1,), (1,)), ((), ())),
        preferred_element_type=jnp.float32,
        precision=precision)                                              # (tb, tc) f32

    logits = raw * inv_feat

    # Fused one-hot margin: tile-local iota vs. (label - tile column offset).
    col_ids = jax.lax.broadcasted_iota(jnp.int32, logits.shape, 1)        # (tb, tc)
    target = label_ref[...] - i * block_c                                 # (tb, 1)
    margin = jnp.float32(s) * jnp.where(col_ids == target,
                                        logits - jnp.float32(m), logits)

    logits_ref[...] = logits.astype(logits_ref.dtype)
    margin_ref[...] = margin.astype(margin_ref.dtype)


def amsoftmax_forward(feat, centers, label, *, s=20.0, m=0.9,
                      block_b=256, block_c=512,
                      matmul_dtype=jnp.bfloat16,
                      out_dtype=jnp.float32):
    """feat: (B, D), centers: (C, D), label: (B,) int -> (logits, margin_logits)."""
    B, D = feat.shape
    C, Dc = centers.shape
    assert D == Dc

    # TPU-friendly sizes: lanes multiples of 128, sublanes multiples of 8.
    d_p = _round_up(D, 128)
    tb = min(block_b, _round_up(B, 8))
    tc = min(block_c, _round_up(C, 128))

    # Generation-aware VMEM budgeting.
    try:
        vmem_cap = int(pltpu.get_tpu_info().vmem_capacity_bytes)
    except Exception:
        vmem_cap = 64 << 20   # conservative fallback (v7x per-TC VMEM)
    budget = int(0.70 * vmem_cap)

    in_item = jnp.dtype(feat.dtype).itemsize
    cent_item = jnp.dtype(centers.dtype).itemsize
    mm_item = jnp.dtype(matmul_dtype).itemsize
    out_item = jnp.dtype(out_dtype).itemsize

    def vmem_need(tb_, tc_):
        return (2 * tb_ * d_p * in_item            # feat tiles (double-buffered)
                + 2 * tc_ * d_p * cent_item        # centers tiles (double-buffered)
                + 2 * tb_ * 128 * 4                # label tiles (lane-padded)
                + 2 * 2 * tb_ * tc_ * out_item     # two output tiles (double-buffered)
                + tc_ * d_p * mm_item)             # normalized-centers scratch

    # Shrink tiles if the working set would overflow VMEM (mostly a v7x /
    # very-large-enc_dim concern).
    while vmem_need(tb, tc) > budget:
        if tc > 128:
            tc //= 2
        elif tb >= 16 and tb % 16 == 0:
            tb //= 2
        else:
            break

    b_p = _round_up(B, tb)
    c_p = _round_up(C, tc)

    # Pad only what actually needs padding (avoid gratuitous full copies of
    # centers — it is typically the big array).
    if b_p > B or d_p > D:
        feat_p = jnp.zeros((b_p, d_p), feat.dtype).at[:B, :D].set(feat)
        if b_p > B:
            # Nonzero norm for padded rows so rsqrt never sees 0.
            feat_p = feat_p.at[B:, 0].set(1.0)
    else:
        feat_p = feat
    if c_p > C or d_p > D:
        cent_p = jnp.zeros((c_p, d_p), centers.dtype).at[:C, :D].set(centers)
        if c_p > C:
            cent_p = cent_p.at[C:, 0].set(1.0)
    else:
        cent_p = centers
    label_p = jnp.zeros((b_p, 1), jnp.int32).at[:B, 0].set(label.astype(jnp.int32))

    # C outer ("parallel" -> megacore on v7x), B inner ("arbitrary" so the
    # centers-norm scratch reuse is core-local and sequential).
    grid = (c_p // tc, b_p // tb)

    precision = (jax.lax.Precision.HIGHEST
                 if jnp.dtype(matmul_dtype) == jnp.dtype(jnp.float32)
                 else jax.lax.Precision.DEFAULT)
    kernel = functools.partial(_amsoftmax_kernel, s=float(s), m=float(m),
                               block_c=tc, matmul_dtype=matmul_dtype,
                               precision=precision)

    vmem_limit = int(min(max(vmem_need(tb, tc) + (8 << 20), 32 << 20),
                         int(0.85 * vmem_cap)))

    logits_p, margin_p = pl.pallas_call(
        kernel,
        out_shape=(
            jax.ShapeDtypeStruct((b_p, c_p), out_dtype),
            jax.ShapeDtypeStruct((b_p, c_p), out_dtype),
        ),
        grid_spec=pltpu.PrefetchScalarGridSpec(
            num_scalar_prefetch=0,
            grid=grid,
            in_specs=[
                pl.BlockSpec((tb, d_p), lambda i, j: (j, 0)),   # feat: varies with inner axis
                pl.BlockSpec((tc, d_p), lambda i, j: (i, 0)),   # centers: constant across inner steps
                pl.BlockSpec((tb, 1), lambda i, j: (j, 0)),     # labels
            ],
            out_specs=(
                pl.BlockSpec((tb, tc), lambda i, j: (j, i)),
                pl.BlockSpec((tb, tc), lambda i, j: (j, i)),
            ),
            scratch_shapes=[pltpu.VMEM((tc, d_p), matmul_dtype)],
        ),
        compiler_params=pltpu.CompilerParams(
            dimension_semantics=("parallel", "arbitrary"),
            vmem_limit_bytes=vmem_limit,
        ),
    )(feat_p, cent_p, label_p)

    if b_p > B or c_p > C:
        logits_p = logits_p[:B, :C]
        margin_p = margin_p[:B, :C]
    return logits_p, margin_p


if __name__ == "__main__":
    # Small, deterministic shapes consistent with AMSoftmax(num_classes, enc_dim).
    B, D, C = 8, 32, 16   # batch, enc_dim, num_classes
    s_param, m_param = 20.0, 0.9

    key = jax.random.PRNGKey(0)
    k_feat, k_cent, k_lab = jax.random.split(key, 3)

    feat = jax.random.normal(k_feat, (B, D), dtype=jnp.float32)
    centers = jax.random.normal(k_cent, (C, D), dtype=jnp.float32)
    label = jax.random.randint(k_lab, (B,), 0, C, dtype=jnp.int32)

    # Pure-JAX reference.
    nf = feat / jnp.linalg.norm(feat, axis=-1, keepdims=True)
    nc = centers / jnp.linalg.norm(centers, axis=-1, keepdims=True)
    ref_logits = nf @ nc.T
    ref_margin = s_param * (ref_logits - jax.nn.one_hot(label, C, dtype=jnp.float32) * m_param)

    # Strict f32 MXU path (Precision.HIGHEST): tight semantic check.
    lg32, mg32 = amsoftmax_forward(feat, centers, label, s=s_param, m=m_param,
                                   matmul_dtype=jnp.float32)
    jax.block_until_ready((lg32, mg32))
    assert lg32.shape == (B, C) and mg32.shape == (B, C)
    assert jnp.allclose(lg32, ref_logits, atol=1e-4, rtol=1e-5)
    assert jnp.allclose(mg32, ref_margin, atol=2e-3, rtol=1e-5)

    # Default fast path: bf16 MXU operands with f32 accumulation (looser check).
    lgbf, mgbf = amsoftmax_forward(feat, centers, label, s=s_param, m=m_param)
    jax.block_until_ready((lgbf, mgbf))
    assert jnp.allclose(lgbf, ref_logits, atol=3e-2, rtol=1e-2)
    assert jnp.allclose(mgbf, ref_margin, atol=6e-1, rtol=1e-2)

    print("KERNEL_OK")
</pallas_src>

<mosaic_0001>
module attributes {stable_mosaic.version = 11 : i64} {
  func.func @_amsoftmax_kernel(%arg0: i32, %arg1: i32, %arg2: memref<8x128xf32, #tpu.memory_space<vmem>>, %arg3: memref<128x128xf32, #tpu.memory_space<vmem>>, %arg4: memref<8x1xi32, #tpu.memory_space<vmem>>, %arg5: memref<8x128xf32, #tpu.memory_space<vmem>>, %arg6: memref<8x128xf32, #tpu.memory_space<vmem>>, %arg7: memref<128x128xf32, #tpu.memory_space<vmem>>) attributes {dimension_semantics = [#tpu.dimension_semantics<parallel>, #tpu.dimension_semantics<arbitrary>], iteration_bounds = array<i64: 1, 1>, scalar_prefetch = 0 : i64, scratch_operands = 1 : i64, tpu.core_type = #tpu.core_type<tc>, window_params = [{transform_indices = @transform_0, window_bounds = array<i64: 8, 128>}, {transform_indices = @transform_1, window_bounds = array<i64: 128, 128>}, {transform_indices = @transform_2, window_bounds = array<i64: 8, 1>}, {transform_indices = @transform_3, window_bounds = array<i64: 8, 128>}, {transform_indices = @transform_4, window_bounds = array<i64: 8, 128>}]} {
    %c0_i32 = arith.constant 0 : i32
    %0 = arith.cmpi eq, %arg1, %c0_i32 : i32
    %1 = arith.extui %0 : i1 to i32
    %c0_i32_0 = arith.constant 0 : i32
    %2 = arith.cmpi ne, %1, %c0_i32_0 : i32
    scf.if %2 {
      %c0_13 = arith.constant 0 : index
      %c0_14 = arith.constant 0 : index
      %26 = vector.load %arg3[%c0_13, %c0_14] : memref<128x128xf32, #tpu.memory_space<vmem>>, vector<128x128xf32>
      %27 = arith.mulf %26, %26 : vector<128x128xf32>
      %cst_15 = arith.constant dense<0.000000e+00> : vector<128xf32>
      %28 = vector.multi_reduction <add>, %27, %cst_15 [1] : vector<128x128xf32> to vector<128xf32>
      %29 = vector.shape_cast %28 : vector<128xf32> to vector<128x1xf32>
      %30 = math.rsqrt %29 : vector<128x1xf32>
      %31 = vector.broadcast %30 : vector<128x1xf32> to vector<128x128xf32>
      %32 = arith.mulf %26, %31 : vector<128x128xf32>
      %c0_16 = arith.constant 0 : index
      %c0_17 = arith.constant 0 : index
      %33 = vector.load %arg7[%c0_16, %c0_17] : memref<128x128xf32, #tpu.memory_space<vmem>>, vector<128x128xf32>
      tpu.vector_store %arg7[%c0_16, %c0_17], %32 {strides = array<i32>} : memref<128x128xf32, #tpu.memory_space<vmem>>, vector<128x128xf32>,
    } else {
    }
    %c0 = arith.constant 0 : index
    %c0_1 = arith.constant 0 : index
    %3 = vector.load %arg2[%c0, %c0_1] : memref<8x128xf32, #tpu.memory_space<vmem>>, vector<8x128xf32>
    %4 = arith.mulf %3, %3 : vector<8x128xf32>
    %cst = arith.constant dense<0.000000e+00> : vector<8xf32>
    %5 = vector.multi_reduction <add>, %4, %cst [1] : vector<8x128xf32> to vector<8xf32>
    %6 = vector.shape_cast %5 : vector<8xf32> to vector<8x1xf32>
    %7 = math.rsqrt %6 : vector<8x1xf32>
    %c0_2 = arith.constant 0 : index
    %c0_3 = arith.constant 0 : index
    %8 = vector.load %arg7[%c0_2, %c0_3] : memref<128x128xf32, #tpu.memory_space<vmem>>, vector<128x128xf32>
    %cst_4 = arith.constant dense<0.000000e+00> : vector<8x128xf32>
    %9 = tpu.matmul %3, %8, %cst_4 {dimension_numbers = #tpu.dot_dimension_numbers<[1], [1], [0], [0], [0, 0, 1, 0], [], []>, precision = #tpu.contract_precision<fp32>} : vector<8x128xf32>, vector<128x128xf32>, vector<8x128xf32> -> vector<8x128xf32>
    %10 = vector.broadcast %7 : vector<8x1xf32> to vector<8x128xf32>
    %11 = arith.mulf %9, %10 : vector<8x128xf32>
    %12 = tpu.iota {dimensions = array<i32: 1>} : vector<8x128xi32>
    %c0_5 = arith.constant 0 : index
    %c0_6 = arith.constant 0 : index
    %13 = vector.load %arg4[%c0_5, %c0_6] : memref<8x1xi32, #tpu.memory_space<vmem>>, vector<8x1xi32>
    %c128_i32 = arith.constant 128 : i32
    %14 = arith.muli %arg0, %c128_i32 : i32
    %15 = vector.broadcast %14 : i32 to vector<8x1xi32>
    %16 = arith.subi %13, %15 : vector<8x1xi32>
    %17 = vector.broadcast %16 : vector<8x1xi32> to vector<8x128xi32>
    %18 = arith.cmpi eq, %12, %17 : vector<8x128xi32>
    %cst_7 = arith.constant 0.899999976 : f32
    %19 = vector.broadcast %cst_7 : f32 to vector<8x128xf32>
    %20 = arith.subf %11, %19 : vector<8x128xf32>
    %21 = arith.select %18, %20, %11 : vector<8x128xi1>, vector<8x128xf32>
    %cst_8 = arith.constant 2.000000e+01 : f32
    %22 = vector.broadcast %cst_8 : f32 to vector<8x128xf32>
    %23 = arith.mulf %22, %21 : vector<8x128xf32>
    %c0_9 = arith.constant 0 : index
    %c0_10 = arith.constant 0 : index
    %24 = vector.load %arg5[%c0_9, %c0_10] : memref<8x128xf32, #tpu.memory_space<vmem>>, vector<8x128xf32>
    tpu.vector_store %arg5[%c0_9, %c0_10], %11 {strides = array<i32>} : memref<8x128xf32, #tpu.memory_space<vmem>>, vector<8x128xf32>,
    %c0_11 = arith.constant 0 : index
    %c0_12 = arith.constant 0 : index
    %25 = vector.load %arg6[%c0_11, %c0_12] : memref<8x128xf32, #tpu.memory_space<vmem>>, vector<8x128xf32>
    tpu.vector_store %arg6[%c0_11, %c0_12], %23 {strides = array<i32>} : memref<8x128xf32, #tpu.memory_space<vmem>>, vector<8x128xf32>,
    return
  }
  func.func @transform_0(%arg0: i32, %arg1: i32) -> (i32, i32) {
    %c0_i32 = arith.constant 0 : i32
    %c0_i32_0 = arith.constant 0 : i32
    return %arg1, %c0_i32 : i32, i32
  }
  func.func @transform_1(%arg0: i32, %arg1: i32) -> (i32, i32) {
    %c0_i32 = arith.constant 0 : i32
    %c0_i32_0 = arith.constant 0 : i32
    return %arg0, %c0_i32 : i32, i32
  }
  func.func @transform_2(%arg0: i32, %arg1: i32) -> (i32, i32) {
    %c0_i32 = arith.constant 0 : i32
    %c0_i32_0 = arith.constant 0 : i32
    return %arg1, %c0_i32 : i32, i32
  }
  func.func @transform_3(%arg0: i32, %arg1: i32) -> (i32, i32) {
    %c0_i32 = arith.constant 0 : i32
    return %arg1, %arg0 : i32, i32
  }
  func.func @transform_4(%arg0: i32, %arg1: i32) -> (i32, i32) {
    %c0_i32 = arith.constant 0 : i32
    return %arg1, %arg0 : i32, i32
  }
}

</mosaic_0001>

<llo_original>
// kernel: tpu_custom_call.1
$region0: #{tpu_custom_call.1}
  #allocation0 [shape = 'u32[]', space=smem, size = 0x4, offset = 0x4, fixed_abs, tag = 'smem constant byte address 0x4 - core index']
  #allocation1 [shape = 'u32[144,128]{1,0:T(1,128)}', space=vmem, size = 0x12000, scoped, tag = 'internal scratch']
  #allocation2 [shape = 'f32[128,128]{1,0:T(8,128)}', space=vmem, size = 0x10000, scoped, tag = 'scratch operand']
  %s0 = inlined_call_operand.vmem [shape: f32[8,128], index: 0, kind: input, shape index: {}]
  %s1 = inlined_call_operand.hbm [shape: f32[128,128], index: 1, kind: input, shape index: {}]
  %s2 = inlined_call_operand.vmem [shape: s32[8,1], index: 2, kind: input, shape index: {}]
  %s3 = inlined_call_operand.hbm [shape: f32[8,128], index: 3, kind: output, shape index: {0}]
  %s4 = inlined_call_operand.hbm [shape: f32[8,128], index: 4, kind: output, shape index: {1}]
  %5 = xla_tuple %s3, %s4
  %s6 = sld [smem:[#allocation0]]
  $region38: #{tpu_custom_call.1} parent=0
    _
  %s8 = ssub.s32 1, %s6
  %s9 = scalar_select 0, %s8, %s6
  $region1: #{tpu_custom_call.1} parent=0
    #allocation3 [shape = 'u8[65536]{0}', space=vmem, size = 0x10000, scoped, tag = 'input window, operand 1, single buffered']
    #allocation4 [shape = 's32[1]{0}', space=sflag, size = 0x4, scoped, tag = 'scoped memory for tpu_custom_call.1']
    #allocation5 [shape = 's32[1]{0}', space=sflag, size = 0x4, scoped, tag = 'scoped memory for tpu_custom_call.1']
    #allocation6 [shape = 'u8[4096]{0}', space=vmem, size = 0x1000, scoped, tag = 'output window, operand 0, single buffered']
    #allocation7 [shape = 'u8[4096]{0}', space=vmem, size = 0x1000, scoped, tag = 'output window, operand 1, single buffered']
    #allocation8 [shape = 's32[1]{0}', space=sflag, size = 0x4, scoped, tag = 'scoped memory for tpu_custom_call.1']
    %10 = vsyncpa [#allocation4], 0
    %11 = vsyncpa [#allocation5], 0
    %12 = vsyncpa [#allocation8], 0
    // Predicated region
    $region2: #{tpu_custom_call.1} parent=1 // pred_check
      _
    $region3: #{tpu_custom_call.1} parent=1 // pred_check_branch
      %14 = sbr.rel (0) target = $region5
    $region4: #{tpu_custom_call.1} parent=1 // pred_region
      _
    $region5: #{tpu_custom_call.1} parent=1 // pred_fallthru
      _
    // Predicated region
    $region6: #{tpu_custom_call.1} parent=1 // pred_check
      _
    $region7: #{tpu_custom_call.1} parent=1 // pred_check_branch
      %16 = sbr.rel (0) target = $region9
    $region8: #{tpu_custom_call.1} parent=1 // pred_region
      %s18 = ssub.s32 2048, 2048
      %19 = vsyncadd [#allocation4], %s18
      %s20 = sshll.u32 [#allocation3], 4
      %s21 = int_to_ptr.vmem [resolvable:$true] %s20
      %26 = dma.hbm_to_vmem [thread:$0]  %s1, 2048, %s21, [#allocation4], 128, 128, 8
    $region9: #{tpu_custom_call.1} parent=1 // pred_fallthru
      _
    // Predicated region
    $region10: #{tpu_custom_call.1} parent=1 // pred_check
      _
    $region11: #{tpu_custom_call.1} parent=1 // pred_check_branch
      %28 = sbr.rel (0) target = $region13
    $region12: #{tpu_custom_call.1} parent=1 // pred_region
      _
    $region13: #{tpu_custom_call.1} parent=1 // pred_fallthru
      _
    // Predicated region
    $region14: #{tpu_custom_call.1} parent=1 // pred_check
      _
    $region15: #{tpu_custom_call.1} parent=1 // pred_check_branch
      %30 = sbr.rel (0) target = $region17
    $region16: #{tpu_custom_call.1} parent=1 // pred_region
      %31 = dma.done [#allocation4], 2048
    $region17: #{tpu_custom_call.1} parent=1 // pred_fallthru
      _
    %p32 = scmp.eq.s32.totalorder 0, 0
    // Predicated region
    $region18: #{tpu_custom_call.1} parent=1 // pred_check
      %p33 = pneg %p32
    $region19: #{tpu_custom_call.1} parent=1 // pred_check_branch
      %35 = sbr.rel (%p33) target = $region21
    $region20: #{tpu_custom_call.1} parent=1 // pred_region
      %v36 = vld [vmem:[#allocation3] sm:$0xff]
      %v37 = vld [vmem:[#allocation3 + $0x8] sm:$0xff]
      %v38 = vld [vmem:[#allocation3 + $0x10] sm:$0xff]
      %v39 = vld [vmem:[#allocation3 + $0x18] sm:$0xff]
      %v40 = vld [vmem:[#allocation3 + $0x20] sm:$0xff]
      %v41 = vld [vmem:[#allocation3 + $0x28] sm:$0xff]
      %v42 = vld [vmem:[#allocation3 + $0x30] sm:$0xff]
      %v43 = vld [vmem:[#allocation3 + $0x38] sm:$0xff]
      %v44 = vld [vmem:[#allocation3 + $0x40] sm:$0xff]
      %v45 = vld [vmem:[#allocation3 + $0x48] sm:$0xff]
      %v46 = vld [vmem:[#allocation3 + $0x50] sm:$0xff]
      %v47 = vld [vmem:[#allocation3 + $0x58] sm:$0xff]
      %v48 = vld [vmem:[#allocation3 + $0x60] sm:$0xff]
      %v49 = vld [vmem:[#allocation3 + $0x68] sm:$0xff]
      %v50 = vld [vmem:[#allocation3 + $0x70] sm:$0xff]
      %v51 = vld [vmem:[#allocation3 + $0x78] sm:$0xff]
      %v52 = vmul.f32 %v36, %v36
      %v53 = vmul.f32 %v37, %v37
      %v54 = vmul.f32 %v38, %v38
      %v55 = vmul.f32 %v39, %v39
      %v56 = vmul.f32 %v40, %v40
      %v57 = vmul.f32 %v41, %v41
      %v58 = vmul.f32 %v42, %v42
      %v59 = vmul.f32 %v43, %v43
      %v60 = vmul.f32 %v44, %v44
      %v61 = vmul.f32 %v45, %v45
      %v62 = vmul.f32 %v46, %v46
      %v63 = vmul.f32 %v47, %v47
      %v64 = vmul.f32 %v48, %v48
      %v65 = vmul.f32 %v49, %v49
      %v66 = vmul.f32 %v50, %v50
      %v67 = vmul.f32 %v51, %v51
      %68 = vadd.xlane.f32.xlu0 %v52
      %v69 = vpop.xlane.xlu0 %68
      %70 = vadd.xlane.f32.xlu0 %v53
      %v71 = vpop.xlane.xlu0 %70
      %72 = vadd.xlane.f32.xlu0 %v54
      %v73 = vpop.xlane.xlu0 %72
      %74 = vadd.xlane.f32.xlu0 %v55
      %v75 = vpop.xlane.xlu0 %74
      %76 = vadd.xlane.f32.xlu0 %v56
      %v77 = vpop.xlane.xlu0 %76
      %78 = vadd.xlane.f32.xlu0 %v57
      %v79 = vpop.xlane.xlu0 %78
      %80 = vadd.xlane.f32.xlu0 %v58
      %v81 = vpop.xlane.xlu0 %80
      %82 = vadd.xlane.f32.xlu0 %v59
      %v83 = vpop.xlane.xlu0 %82
      %84 = vadd.xlane.f32.xlu0 %v60
      %v85 = vpop.xlane.xlu0 %84
      %86 = vadd.xlane.f32.xlu0 %v61
      %v87 = vpop.xlane.xlu0 %86
      %88 = vadd.xlane.f32.xlu0 %v62
      %v89 = vpop.xlane.xlu0 %88
      %90 = vadd.xlane.f32.xlu0 %v63
      %v91 = vpop.xlane.xlu0 %90
      %92 = vadd.xlane.f32.xlu0 %v64
      %v93 = vpop.xlane.xlu0 %92
      %94 = vadd.xlane.f32.xlu0 %v65
      %v95 = vpop.xlane.xlu0 %94
      %96 = vadd.xlane.f32.xlu0 %v66
      %v97 = vpop.xlane.xlu0 %96
      %98 = vadd.xlane.f32.xlu0 %v67
      %v99 = vpop.xlane.xlu0 %98
      %v100 = vrsqrt.pop %v69
      %v101 = vrsqrt.pop %v71
      %v102 = vrsqrt.pop %v73
      %v103 = vrsqrt.pop %v75
      %v104 = vrsqrt.pop %v77
      %v105 = vrsqrt.pop %v79
      %v106 = vrsqrt.pop %v81
      %v107 = vrsqrt.pop %v83
      %v108 = vrsqrt.pop %v85
      %v109 = vrsqrt.pop %v87
      %v110 = vrsqrt.pop %v89
      %v111 = vrsqrt.pop %v91
      %v112 = vrsqrt.pop %v93
      %v113 = vrsqrt.pop %v95
      %v114 = vrsqrt.pop %v97
      %v115 = vrsqrt.pop %v99
      %v116 = vmul.f32 %v36, %v100
      %v117 = vmul.f32 %v37, %v101
      %v118 = vmul.f32 %v38, %v102
      %v119 = vmul.f32 %v39, %v103
      %v120 = vmul.f32 %v40, %v104
      %v121 = vmul.f32 %v41, %v105
      %v122 = vmul.f32 %v42, %v106
      %v123 = vmul.f32 %v43, %v107
      %v124 = vmul.f32 %v44, %v108
      %v125 = vmul.f32 %v45, %v109
      %v126 = vmul.f32 %v46, %v110
      %v127 = vmul.f32 %v47, %v111
      %v128 = vmul.f32 %v48, %v112
      %v129 = vmul.f32 %v49, %v113
      %v130 = vmul.f32 %v50, %v114
      %v131 = vmul.f32 %v51, %v115
      %132 = vst [vmem:[#allocation2] sm:$0xff] %v116
      %133 = vst [vmem:[#allocation2 + $0x8] sm:$0xff] %v117
      %134 = vst [vmem:[#allocation2 + $0x10] sm:$0xff] %v118
      %135 = vst [vmem:[#allocation2 + $0x18] sm:$0xff] %v119
      %136 = vst [vmem:[#allocation2 + $0x20] sm:$0xff] %v120
      %137 = vst [vmem:[#allocation2 + $0x28] sm:$0xff] %v121
      %138 = vst [vmem:[#allocation2 + $0x30] sm:$0xff] %v122
      %139 = vst [vmem:[#allocation2 + $0x38] sm:$0xff] %v123
      %140 = vst [vmem:[#allocation2 + $0x40] sm:$0xff] %v124
      %141 = vst [vmem:[#allocation2 + $0x48] sm:$0xff] %v125
      %142 = vst [vmem:[#allocation2 + $0x50] sm:$0xff] %v126
      %143 = vst [vmem:[#allocation2 + $0x58] sm:$0xff] %v127
      %144 = vst [vmem:[#allocation2 + $0x60] sm:$0xff] %v128
      %145 = vst [vmem:[#allocation2 + $0x68] sm:$0xff] %v129
      %146 = vst [vmem:[#allocation2 + $0x70] sm:$0xff] %v130
      %147 = vst [vmem:[#allocation2 + $0x78] sm:$0xff] %v131
    $region21: #{tpu_custom_call.1} parent=1 // pred_fallthru
      _
    %v148 = vld [vmem:[%s0] sm:$0xff]
    %v149 = vmul.f32 %v148, %v148
    %150 = vadd.xlane.f32.xlu0 %v149
    %v151 = vpop.xlane.xlu0 %150
    %v152 = vrsqrt.pop %v151
    %v153 = vld [vmem:[#allocation2] sm:$0xff]
    %v154 = vld [vmem:[#allocation2 + $0x8] sm:$0xff]
    %v155 = vld [vmem:[#allocation2 + $0x10] sm:$0xff]
    %v156 = vld [vmem:[#allocation2 + $0x18] sm:$0xff]
    %v157 = vld [vmem:[#allocation2 + $0x20] sm:$0xff]
    %v158 = vld [vmem:[#allocation2 + $0x28] sm:$0xff]
    %v159 = vld [vmem:[#allocation2 + $0x30] sm:$0xff]
    %v160 = vld [vmem:[#allocation2 + $0x38] sm:$0xff]
    %v161 = vld [vmem:[#allocation2 + $0x40] sm:$0xff]
    %v162 = vld [vmem:[#allocation2 + $0x48] sm:$0xff]
    %v163 = vld [vmem:[#allocation2 + $0x50] sm:$0xff]
    %v164 = vld [vmem:[#allocation2 + $0x58] sm:$0xff]
    %v165 = vld [vmem:[#allocation2 + $0x60] sm:$0xff]
    %v166 = vld [vmem:[#allocation2 + $0x68] sm:$0xff]
    %v167 = vld [vmem:[#allocation2 + $0x70] sm:$0xff]
    %v168 = vld [vmem:[#allocation2 + $0x78] sm:$0xff]
    %169 = vmatprep.subr.mxu0 0.0
    %v170 = vand.u32 %v153, 4294901760
    %171 = vmatpush1.xpose.msra.mxu0 %v170
    %172 = vmatprep.subr.mxu0 0.0
    %v173 = vand.u32 %v154, 4294901760
    %174 = vmatpush1.xpose.msra.mxu0 %v173
    %175 = vmatprep.subr.mxu0 0.0
    %v176 = vand.u32 %v155, 4294901760
    %177 = vmatpush1.xpose.msra.mxu0 %v176
    %178 = vmatprep.subr.mxu0 0.0
    %v179 = vand.u32 %v156, 4294901760
    %180 = vmatpush1.xpose.msra.mxu0 %v179
    %181 = vmatprep.subr.mxu0 0.0
    %v182 = vand.u32 %v157, 4294901760
    %183 = vmatpush1.xpose.msra.mxu0 %v182
    %184 = vmatprep.subr.mxu0 0.0
    %v185 = vand.u32 %v158, 4294901760
    %186 = vmatpush1.xpose.msra.mxu0 %v185
    %187 = vmatprep.subr.mxu0 0.0
    %v188 = vand.u32 %v159, 4294901760
    %189 = vmatpush1.xpose.msra.mxu0 %v188
    %190 = vmatprep.subr.mxu0 0.0
    %v191 = vand.u32 %v160, 4294901760
    %192 = vmatpush1.xpose.msra.mxu0 %v191
    %193 = vmatprep.subr.mxu0 0.0
    %v194 = vand.u32 %v161, 4294901760
    %195 = vmatpush1.xpose.msra.mxu0 %v194
    %196 = vmatprep.subr.mxu0 0.0
    %v197 = vand.u32 %v162, 4294901760
    %198 = vmatpush1.xpose.msra.mxu0 %v197
    %199 = vmatprep.subr.mxu0 0.0
    %v200 = vand.u32 %v163, 4294901760
    %201 = vmatpush1.xpose.msra.mxu0 %v200
    %202 = vmatprep.subr.mxu0 0.0
    %v203 = vand.u32 %v164, 4294901760
    %204 = vmatpush1.xpose.msra.mxu0 %v203
    %205 = vmatprep.subr.mxu0 0.0
    %v206 = vand.u32 %v165, 4294901760
    %207 = vmatpush1.xpose.msra.mxu0 %v206
    %208 = vmatprep.subr.mxu0 0.0
    %v209 = vand.u32 %v166, 4294901760
    %210 = vmatpush1.xpose.msra.mxu0 %v209
    %211 = vmatprep.subr.mxu0 0.0
    %v212 = vand.u32 %v167, 4294901760
    %213 = vmatpush1.xpose.msra.mxu0 %v212
    %214 = vmatprep.subr.mxu0 0.0
    %v215 = vand.u32 %v168, 4294901760
    %216 = vmatpush1.xpose.msra.mxu0 %v215
    %217 = vmatprep.subr.mxu0 0.0
    %218 = vmatpush1.xpose.msra.mxu0 0.0
    %219 = vmatprep.subr.mxu0 0.0
    %220 = vmatpush1.xpose.msra.mxu0 0.0
    %221 = vmatprep.subr.mxu0 0.0
    %222 = vmatpush1.xpose.msra.mxu0 0.0
    %223 = vmatprep.subr.mxu0 0.0
    %224 = vmatpush1.xpose.msra.mxu0 0.0
    %225 = vmatprep.subr.mxu0 0.0
    %226 = vmatpush1.xpose.msra.mxu0 0.0
    %227 = vmatprep.subr.mxu0 0.0
    %228 = vmatpush1.xpose.msra.mxu0 0.0
    %229 = vmatprep.subr.mxu0 0.0
    %230 = vmatpush1.xpose.msra.mxu0 0.0
    %231 = vmatprep.subr.mxu0 0.0
    %232 = vmatpush1.xpose.msra.mxu0 0.0
    %233 = vmatprep.subr.mxu0 0.0
    %234 = vmatpush1.xpose.msra.mxu0 0.0
    %235 = vmatprep.subr.mxu0 0.0
    %236 = vmatpush1.xpose.msra.mxu0 0.0
    %237 = vmatprep.subr.mxu0 0.0
    %238 = vmatpush1.xpose.msra.mxu0 0.0
    %239 = vmatprep.subr.mxu0 0.0
    %240 = vmatpush1.xpose.msra.mxu0 0.0
    %241 = vmatprep.subr.mxu0 0.0
    %242 = vmatpush1.xpose.msra.mxu0 0.0
    %243 = vmatprep.subr.mxu0 0.0
    %244 = vmatpush1.xpose.msra.mxu0 0.0
    %245 = vmatprep.subr.mxu0 0.0
    %246 = vmatpush1.xpose.msra.mxu0 0.0
    %247 = vmatprep.subr.mxu0 0.0
    %248 = vmatpush1.xpose.msra.mxu0 0.0
    %249 = vmatprep.mubr.f32.mxu0 0.0
    %v250 = vand.u32 %v148, 4294901760
    %v251 = vsub.f32 %v148, %v250
    %v252 = vand.u32 %v251, 4294901760
    %v253 = vsub.f32 %v251, %v252
    %v254 = vand.u32 %v253, 4294901760
    %255 = vmatmul.mubr.f32.gmra.mrb[0].mxu0 %v254
    %v256 = vpop.f32.mrb[0].mxu0
    %v257 = vadd.f32 0.0, %v256
    %v258 = vpop.f32.mrb[0].mxu0
    %259 = vdwg.mxu0
    %260 = vmatprep.subr.mxu0 0.0
    %v261 = vand.u32 %v153, 4294901760
    %v262 = vsub.f32 %v153, %v261
    %v263 = vand.u32 %v262, 4294901760
    %v264 = vsub.f32 %v262, %v263
    %v265 = vand.u32 %v264, 4294901760
    %266 = vmatpush1.xpose.msra.mxu0 %v265
    %267 = vmatprep.subr.mxu0 0.0
    %v268 = vand.u32 %v154, 4294901760
    %v269 = vsub.f32 %v154, %v268
    %v270 = vand.u32 %v269, 4294901760
    %v271 = vsub.f32 %v269, %v270
    %v272 = vand.u32 %v271, 4294901760
    %273 = vmatpush1.xpose.msra.mxu0 %v272
    %274 = vmatprep.subr.mxu0 0.0
    %v275 = vand.u32 %v155, 4294901760
    %v276 = vsub.f32 %v155, %v275
    %v277 = vand.u32 %v276, 4294901760
    %v278 = vsub.f32 %v276, %v277
    %v279 = vand.u32 %v278, 4294901760
    %280 = vmatpush1.xpose.msra.mxu0 %v279
    %281 = vmatprep.subr.mxu0 0.0
    %v282 = vand.u32 %v156, 4294901760
    %v283 = vsub.f32 %v156, %v282
    %v284 = vand.u32 %v283, 4294901760
    %v285 = vsub.f32 %v283, %v284
    %v286 = vand.u32 %v285, 4294901760
    %287 = vmatpush1.xpose.msra.mxu0 %v286
    %288 = vmatprep.subr.mxu0 0.0
    %v289 = vand.u32 %v157, 4294901760
    %v290 = vsub.f32 %v157, %v289
    %v291 = vand.u32 %v290, 4294901760
    %v292 = vsub.f32 %v290, %v291
    %v293 = vand.u32 %v292, 4294901760
    %294 = vmatpush1.xpose.msra.mxu0 %v293
    %295 = vmatprep.subr.mxu0 0.0
    %v296 = vand.u32 %v158, 4294901760
    %v297 = vsub.f32 %v158, %v296
    %v298 = vand.u32 %v297, 4294901760
    %v299 = vsub.f32 %v297, %v298
    %v300 = vand.u32 %v299, 4294901760
    %301 = vmatpush1.xpose.msra.mxu0 %v300
    %302 = vmatprep.subr.mxu0 0.0
    %v303 = vand.u32 %v159, 4294901760
    %v304 = vsub.f32 %v159, %v303
    %v305 = vand.u32 %v304, 4294901760
    %v306 = vsub.f32 %v304, %v305
    %v307 = vand.u32 %v306, 4294901760
    %308 = vmatpush1.xpose.msra.mxu0 %v307
    %309 = vmatprep.subr.mxu0 0.0
    %v310 = vand.u32 %v160, 4294901760
    %v311 = vsub.f32 %v160, %v310
    %v312 = vand.u32 %v311, 4294901760
    %v313 = vsub.f32 %v311, %v312
    %v314 = vand.u32 %v313, 4294901760
    %315 = vmatpush1.xpose.msra.mxu0 %v314
    %316 = vmatprep.subr.mxu0 0.0
    %v317 = vand.u32 %v161, 4294901760
    %v318 = vsub.f32 %v161, %v317
    %v319 = vand.u32 %v318, 4294901760
    %v320 = vsub.f32 %v318, %v319
    %v321 = vand.u32 %v320, 4294901760
    %322 = vmatpush1.xpose.msra.mxu0 %v321
    %323 = vmatprep.subr.mxu0 0.0
    %v324 = vand.u32 %v162, 4294901760
    %v325 = vsub.f32 %v162, %v324
    %v326 = vand.u32 %v325, 4294901760
    %v327 = vsub.f32 %v325, %v326
    %v328 = vand.u32 %v327, 4294901760
    %329 = vmatpush1.xpose.msra.mxu0 %v328
    %330 = vmatprep.subr.mxu0 0.0
    %v331 = vand.u32 %v163, 4294901760
    %v332 = vsub.f32 %v163, %v331
    %v333 = vand.u32 %v332, 4294901760
    %v334 = vsub.f32 %v332, %v333
    %v335 = vand.u32 %v334, 4294901760
    %336 = vmatpush1.xpose.msra.mxu0 %v335
    %337 = vmatprep.subr.mxu0 0.0
    %v338 = vand.u32 %v164, 4294901760
    %v339 = vsub.f32 %v164, %v338
    %v340 = vand.u32 %v339, 4294901760
    %v341 = vsub.f32 %v339, %v340
    %v342 = vand.u32 %v341, 4294901760
    %343 = vmatpush1.xpose.msra.mxu0 %v342
    %344 = vmatprep.subr.mxu0 0.0
    %v345 = vand.u32 %v165, 4294901760
    %v346 = vsub.f32 %v165, %v345
    %v347 = vand.u32 %v346, 4294901760
    %v348 = vsub.f32 %v346, %v347
    %v349 = vand.u32 %v348, 4294901760
    %350 = vmatpush1.xpose.msra.mxu0 %v349
    %351 = vmatprep.subr.mxu0 0.0
    %v352 = vand.u32 %v166, 4294901760
    %v353 = vsub.f32 %v166, %v352
    %v354 = vand.u32 %v353, 4294901760
    %v355 = vsub.f32 %v353, %v354
    %v356 = vand.u32 %v355, 4294901760
    %357 = vmatpush1.xpose.msra.mxu0 %v356
    %358 = vmatprep.subr.mxu0 0.0
    %v359 = vand.u32 %v167, 4294901760
    %v360 = vsub.f32 %v167, %v359
    %v361 = vand.u32 %v360, 4294901760
    %v362 = vsub.f32 %v360, %v361
    %v363 = vand.u32 %v362, 4294901760
    %364 = vmatpush1.xpose.msra.mxu0 %v363
    %365 = vmatprep.subr.mxu0 0.0
    %v366 = vand.u32 %v168, 4294901760
    %v367 = vsub.f32 %v168, %v366
    %v368 = vand.u32 %v367, 4294901760
    %v369 = vsub.f32 %v367, %v368
    %v370 = vand.u32 %v369, 4294901760
    %371 = vmatpush1.xpose.msra.mxu0 %v370
    %372 = vmatprep.subr.mxu0 0.0
    %373 = vmatpush1.xpose.msra.mxu0 0.0
    %374 = vmatprep.subr.mxu0 0.0
    %375 = vmatpush1.xpose.msra.mxu0 0.0
    %376 = vmatprep.subr.mxu0 0.0
    %377 = vmatpush1.xpose.msra.mxu0 0.0
    %378 = vmatprep.subr.mxu0 0.0
    %379 = vmatpush1.xpose.msra.mxu0 0.0
    %380 = vmatprep.subr.mxu0 0.0
    %381 = vmatpush1.xpose.msra.mxu0 0.0
    %382 = vmatprep.subr.mxu0 0.0
    %383 = vmatpush1.xpose.msra.mxu0 0.0
    %384 = vmatprep.subr.mxu0 0.0
    %385 = vmatpush1.xpose.msra.mxu0 0.0
    %386 = vmatprep.subr.mxu0 0.0
    %387 = vmatpush1.xpose.msra.mxu0 0.0
    %388 = vmatprep.subr.mxu0 0.0
    %389 = vmatpush1.xpose.msra.mxu0 0.0
    %390 = vmatprep.subr.mxu0 0.0
    %391 = vmatpush1.xpose.msra.mxu0 0.0
    %392 = vmatprep.subr.mxu0 0.0
    %393 = vmatpush1.xpose.msra.mxu0 0.0
    %394 = vmatprep.subr.mxu0 0.0
    %395 = vmatpush1.xpose.msra.mxu0 0.0
    %396 = vmatprep.subr.mxu0 0.0
    %397 = vmatpush1.xpose.msra.mxu0 0.0
    %398 = vmatprep.subr.mxu0 0.0
    %399 = vmatpush1.xpose.msra.mxu0 0.0
    %400 = vmatprep.subr.mxu0 0.0
    %401 = vmatpush1.xpose.msra.mxu0 0.0
    %402 = vmatprep.subr.mxu0 0.0
    %403 = vmatpush1.xpose.msra.mxu0 0.0
    %404 = vmatprep.mubr.f32.mxu0 0.0
    %v405 = vand.u32 %v148, 4294901760
    %406 = vmatmul.mubr.f32.gmra.mrb[0].mxu0 %v405
    %v407 = vpop.f32.mrb[0].mxu0
    %v408 = vadd.f32 %v257, %v407
    %v409 = vpop.f32.mrb[0].mxu0
    %410 = vdwg.mxu0
    %411 = vmatprep.subr.mxu0 0.0
    %v412 = vand.u32 %v153, 4294901760
    %v413 = vsub.f32 %v153, %v412
    %414 = vmatpush1.xpose.msra.mxu0 %v413
    %415 = vmatprep.subr.mxu0 0.0
    %v416 = vand.u32 %v154, 4294901760
    %v417 = vsub.f32 %v154, %v416
    %418 = vmatpush1.xpose.msra.mxu0 %v417
    %419 = vmatprep.subr.mxu0 0.0
    %v420 = vand.u32 %v155, 4294901760
    %v421 = vsub.f32 %v155, %v420
    %422 = vmatpush1.xpose.msra.mxu0 %v421
    %423 = vmatprep.subr.mxu0 0.0
    %v424 = vand.u32 %v156, 4294901760
    %v425 = vsub.f32 %v156, %v424
    %426 = vmatpush1.xpose.msra.mxu0 %v425
    %427 = vmatprep.subr.mxu0 0.0
    %v428 = vand.u32 %v157, 4294901760
    %v429 = vsub.f32 %v157, %v428
    %430 = vmatpush1.xpose.msra.mxu0 %v429
    %431 = vmatprep.subr.mxu0 0.0
    %v432 = vand.u32 %v158, 4294901760
    %v433 = vsub.f32 %v158, %v432
    %434 = vmatpush1.xpose.msra.mxu0 %v433
    %435 = vmatprep.subr.mxu0 0.0
    %v436 = vand.u32 %v159, 4294901760
    %v437 = vsub.f32 %v159, %v436
    %438 = vmatpush1.xpose.msra.mxu0 %v437
    %439 = vmatprep.subr.mxu0 0.0
    %v440 = vand.u32 %v160, 4294901760
    %v441 = vsub.f32 %v160, %v440
    %442 = vmatpush1.xpose.msra.mxu0 %v441
    %443 = vmatprep.subr.mxu0 0.0
    %v444 = vand.u32 %v161, 4294901760
    %v445 = vsub.f32 %v161, %v444
    %446 = vmatpush1.xpose.msra.mxu0 %v445
    %447 = vmatprep.subr.mxu0 0.0
    %v448 = vand.u32 %v162, 4294901760
    %v449 = vsub.f32 %v162, %v448
    %450 = vmatpush1.xpose.msra.mxu0 %v449
    %451 = vmatprep.subr.mxu0 0.0
    %v452 = vand.u32 %v163, 4294901760
    %v453 = vsub.f32 %v163, %v452
    %454 = vmatpush1.xpose.msra.mxu0 %v453
    %455 = vmatprep.subr.mxu0 0.0
    %v456 = vand.u32 %v164, 4294901760
    %v457 = vsub.f32 %v164, %v456
    %458 = vmatpush1.xpose.msra.mxu0 %v457
    %459 = vmatprep.subr.mxu0 0.0
    %v460 = vand.u32 %v165, 4294901760
    %v461 = vsub.f32 %v165, %v460
    %462 = vmatpush1.xpose.msra.mxu0 %v461
    %463 = vmatprep.subr.mxu0 0.0
    %v464 = vand.u32 %v166, 4294901760
    %v465 = vsub.f32 %v166, %v464
    %466 = vmatpush1.xpose.msra.mxu0 %v465
    %467 = vmatprep.subr.mxu0 0.0
    %v468 = vand.u32 %v167, 4294901760
    %v469 = vsub.f32 %v167, %v468
    %470 = vmatpush1.xpose.msra.mxu0 %v469
    %471 = vmatprep.subr.mxu0 0.0
    %v472 = vand.u32 %v168, 4294901760
    %v473 = vsub.f32 %v168, %v472
    %474 = vmatpush1.xpose.msra.mxu0 %v473
    %475 = vmatprep.subr.mxu0 0.0
    %476 = vmatpush1.xpose.msra.mxu0 0.0
    %477 = vmatprep.subr.mxu0 0.0
    %478 = vmatpush1.xpose.msra.mxu0 0.0
    %479 = vmatprep.subr.mxu0 0.0
    %480 = vmatpush1.xpose.msra.mxu0 0.0
    %481 = vmatprep.subr.mxu0 0.0
    %482 = vmatpush1.xpose.msra.mxu0 0.0
    %483 = vmatprep.subr.mxu0 0.0
    %484 = vmatpush1.xpose.msra.mxu0 0.0
    %485 = vmatprep.subr.mxu0 0.0
    %486 = vmatpush1.xpose.msra.mxu0 0.0
    %487 = vmatprep.subr.mxu0 0.0
    %488 = vmatpush1.xpose.msra.mxu0 0.0
    %489 = vmatprep.subr.mxu0 0.0
    %490 = vmatpush1.xpose.msra.mxu0 0.0
    %491 = vmatprep.subr.mxu0 0.0
    %492 = vmatpush1.xpose.msra.mxu0 0.0
    %493 = vmatprep.subr.mxu0 0.0
    %494 = vmatpush1.xpose.msra.mxu0 0.0
    %495 = vmatprep.subr.mxu0 0.0
    %496 = vmatpush1.xpose.msra.mxu0 0.0
    %497 = vmatprep.subr.mxu0 0.0
    %498 = vmatpush1.xpose.msra.mxu0 0.0
    %499 = vmatprep.subr.mxu0 0.0
    %500 = vmatpush1.xpose.msra.mxu0 0.0
    %501 = vmatprep.subr.mxu0 0.0
    %502 = vmatpush1.xpose.msra.mxu0 0.0
    %503 = vmatprep.subr.mxu0 0.0
    %504 = vmatpush1.xpose.msra.mxu0 0.0
    %505 = vmatprep.subr.mxu0 0.0
    %506 = vmatpush1.xpose.msra.mxu0 0.0
    %507 = vmatprep.mubr.f32.mxu0 0.0
    %v508 = vand.u32 %v148, 4294901760
    %v509 = vsub.f32 %v148, %v508
    %510 = vmatmul.mubr.f32.gmra.mrb[0].mxu0 %v509
    %v511 = vpop.f32.mrb[0].mxu0
    %v512 = vadd.f32 %v408, %v511
    %v513 = vpop.f32.mrb[0].mxu0
    %514 = vdwg.mxu0
    %515 = vmatprep.subr.mxu0 0.0
    %v516 = vand.u32 %v153, 4294901760
    %517 = vmatpush1.xpose.msra.mxu0 %v516
    %518 = vmatprep.subr.mxu0 0.0
    %v519 = vand.u32 %v154, 4294901760
    %520 = vmatpush1.xpose.msra.mxu0 %v519
    %521 = vmatprep.subr.mxu0 0.0
    %v522 = vand.u32 %v155, 4294901760
    %523 = vmatpush1.xpose.msra.mxu0 %v522
    %524 = vmatprep.subr.mxu0 0.0
    %v525 = vand.u32 %v156, 4294901760
    %526 = vmatpush1.xpose.msra.mxu0 %v525
    %527 = vmatprep.subr.mxu0 0.0
    %v528 = vand.u32 %v157, 4294901760
    %529 = vmatpush1.xpose.msra.mxu0 %v528
    %530 = vmatprep.subr.mxu0 0.0
    %v531 = vand.u32 %v158, 4294901760
    %532 = vmatpush1.xpose.msra.mxu0 %v531
    %533 = vmatprep.subr.mxu0 0.0
    %v534 = vand.u32 %v159, 4294901760
    %535 = vmatpush1.xpose.msra.mxu0 %v534
    %536 = vmatprep.subr.mxu0 0.0
    %v537 = vand.u32 %v160, 4294901760
    %538 = vmatpush1.xpose.msra.mxu0 %v537
    %539 = vmatprep.subr.mxu0 0.0
    %v540 = vand.u32 %v161, 4294901760
    %541 = vmatpush1.xpose.msra.mxu0 %v540
    %542 = vmatprep.subr.mxu0 0.0
    %v543 = vand.u32 %v162, 4294901760
    %544 = vmatpush1.xpose.msra.mxu0 %v543
    %545 = vmatprep.subr.mxu0 0.0
    %v546 = vand.u32 %v163, 4294901760
    %547 = vmatpush1.xpose.msra.mxu0 %v546
    %548 = vmatprep.subr.mxu0 0.0
    %v549 = vand.u32 %v164, 4294901760
    %550 = vmatpush1.xpose.msra.mxu0 %v549
    %551 = vmatprep.subr.mxu0 0.0
    %v552 = vand.u32 %v165, 4294901760
    %553 = vmatpush1.xpose.msra.mxu0 %v552
    %554 = vmatprep.subr.mxu0 0.0
    %v555 = vand.u32 %v166, 4294901760
    %556 = vmatpush1.xpose.msra.mxu0 %v555
    %557 = vmatprep.subr.mxu0 0.0
    %v558 = vand.u32 %v167, 4294901760
    %559 = vmatpush1.xpose.msra.mxu0 %v558
    %560 = vmatprep.subr.mxu0 0.0
    %v561 = vand.u32 %v168, 4294901760
    %562 = vmatpush1.xpose.msra.mxu0 %v561
    %563 = vmatprep.subr.mxu0 0.0
    %564 = vmatpush1.xpose.msra.mxu0 0.0
    %565 = vmatprep.subr.mxu0 0.0
    %566 = vmatpush1.xpose.msra.mxu0 0.0
    %567 = vmatprep.subr.mxu0 0.0
    %568 = vmatpush1.xpose.msra.mxu0 0.0
    %569 = vmatprep.subr.mxu0 0.0
    %570 = vmatpush1.xpose.msra.mxu0 0.0
    %571 = vmatprep.subr.mxu0 0.0
    %572 = vmatpush1.xpose.msra.mxu0 0.0
    %573 = vmatprep.subr.mxu0 0.0
    %574 = vmatpush1.xpose.msra.mxu0 0.0
    %575 = vmatprep.subr.mxu0 0.0
    %576 = vmatpush1.xpose.msra.mxu0 0.0
    %577 = vmatprep.subr.mxu0 0.0
    %578 = vmatpush1.xpose.msra.mxu0 0.0
    %579 = vmatprep.subr.mxu0 0.0
    %580 = vmatpush1.xpose.msra.mxu0 0.0
    %581 = vmatprep.subr.mxu0 0.0
    %582 = vmatpush1.xpose.msra.mxu0 0.0
    %583 = vmatprep.subr.mxu0 0.0
    %584 = vmatpush1.xpose.msra.mxu0 0.0
    %585 = vmatprep.subr.mxu0 0.0
    %586 = vmatpush1.xpose.msra.mxu0 0.0
    %587 = vmatprep.subr.mxu0 0.0
    %588 = vmatpush1.xpose.msra.mxu0 0.0
    %589 = vmatprep.subr.mxu0 0.0
    %590 = vmatpush1.xpose.msra.mxu0 0.0
    %591 = vmatprep.subr.mxu0 0.0
    %592 = vmatpush1.xpose.msra.mxu0 0.0
    %593 = vmatprep.subr.mxu0 0.0
    %594 = vmatpush1.xpose.msra.mxu0 0.0
    %595 = vmatprep.mubr.f32.mxu0 0.0
    %v596 = vand.u32 %v148, 4294901760
    %v597 = vsub.f32 %v148, %v596
    %v598 = vand.u32 %v597, 4294901760
    %599 = vmatmul.mubr.f32.gmra.mrb[0].mxu0 %v598
    %v600 = vpop.f32.mrb[0].mxu0
    %v601 = vadd.f32 %v512, %v600
    %v602 = vpop.f32.mrb[0].mxu0
    %603 = vdwg.mxu0
    %604 = vmatprep.subr.mxu0 0.0
    %v605 = vand.u32 %v153, 4294901760
    %v606 = vsub.f32 %v153, %v605
    %v607 = vand.u32 %v606, 4294901760
    %608 = vmatpush1.xpose.msra.mxu0 %v607
    %609 = vmatprep.subr.mxu0 0.0
    %v610 = vand.u32 %v154, 4294901760
    %v611 = vsub.f32 %v154, %v610
    %v612 = vand.u32 %v611, 4294901760
    %613 = vmatpush1.xpose.msra.mxu0 %v612
    %614 = vmatprep.subr.mxu0 0.0
    %v615 = vand.u32 %v155, 4294901760
    %v616 = vsub.f32 %v155, %v615
    %v617 = vand.u32 %v616, 4294901760
    %618 = vmatpush1.xpose.msra.mxu0 %v617
    %619 = vmatprep.subr.mxu0 0.0
    %v620 = vand.u32 %v156, 4294901760
    %v621 = vsub.f32 %v156, %v620
    %v622 = vand.u32 %v621, 4294901760
    %623 = vmatpush1.xpose.msra.mxu0 %v622
    %624 = vmatprep.subr.mxu0 0.0
    %v625 = vand.u32 %v157, 4294901760
    %v626 = vsub.f32 %v157, %v625
    %v627 = vand.u32 %v626, 4294901760
    %628 = vmatpush1.xpose.msra.mxu0 %v627
    %629 = vmatprep.subr.mxu0 0.0
    %v630 = vand.u32 %v158, 4294901760
    %v631 = vsub.f32 %v158, %v630
    %v632 = vand.u32 %v631, 4294901760
    %633 = vmatpush1.xpose.msra.mxu0 %v632
    %634 = vmatprep.subr.mxu0 0.0
    %v635 = vand.u32 %v159, 4294901760
    %v636 = vsub.f32 %v159, %v635
    %v637 = vand.u32 %v636, 4294901760
    %638 = vmatpush1.xpose.msra.mxu0 %v637
    %639 = vmatprep.subr.mxu0 0.0
    %v640 = vand.u32 %v160, 4294901760
    %v641 = vsub.f32 %v160, %v640
    %v642 = vand.u32 %v641, 4294901760
    %643 = vmatpush1.xpose.msra.mxu0 %v642
    %644 = vmatprep.subr.mxu0 0.0
    %v645 = vand.u32 %v161, 4294901760
    %v646 = vsub.f32 %v161, %v645
    %v647 = vand.u32 %v646, 4294901760
    %648 = vmatpush1.xpose.msra.mxu0 %v647
    %649 = vmatprep.subr.mxu0 0.0
    %v650 = vand.u32 %v162, 4294901760
    %v651 = vsub.f32 %v162, %v650
    %v652 = vand.u32 %v651, 4294901760
    %653 = vmatpush1.xpose.msra.mxu0 %v652
    %654 = vmatprep.subr.mxu0 0.0
    %v655 = vand.u32 %v163, 4294901760
    %v656 = vsub.f32 %v163, %v655
    %v657 = vand.u32 %v656, 4294901760
    %658 = vmatpush1.xpose.msra.mxu0 %v657
    %659 = vmatprep.subr.mxu0 0.0
    %v660 = vand.u32 %v164, 4294901760
    %v661 = vsub.f32 %v164, %v660
    %v662 = vand.u32 %v661, 4294901760
    %663 = vmatpush1.xpose.msra.mxu0 %v662
    %664 = vmatprep.subr.mxu0 0.0
    %v665 = vand.u32 %v165, 4294901760
    %v666 = vsub.f32 %v165, %v665
    %v667 = vand.u32 %v666, 4294901760
    %668 = vmatpush1.xpose.msra.mxu0 %v667
    %669 = vmatprep.subr.mxu0 0.0
    %v670 = vand.u32 %v166, 4294901760
    %v671 = vsub.f32 %v166, %v670
    %v672 = vand.u32 %v671, 4294901760
    %673 = vmatpush1.xpose.msra.mxu0 %v672
    %674 = vmatprep.subr.mxu0 0.0
    %v675 = vand.u32 %v167, 4294901760
    %v676 = vsub.f32 %v167, %v675
    %v677 = vand.u32 %v676, 4294901760
    %678 = vmatpush1.xpose.msra.mxu0 %v677
    %679 = vmatprep.subr.mxu0 0.0
    %v680 = vand.u32 %v168, 4294901760
    %v681 = vsub.f32 %v168, %v680
    %v682 = vand.u32 %v681, 4294901760
    %683 = vmatpush1.xpose.msra.mxu0 %v682
    %684 = vmatprep.subr.mxu0 0.0
    %685 = vmatpush1.xpose.msra.mxu0 0.0
    %686 = vmatprep.subr.mxu0 0.0
    %687 = vmatpush1.xpose.msra.mxu0 0.0
    %688 = vmatprep.subr.mxu0 0.0
    %689 = vmatpush1.xpose.msra.mxu0 0.0
    %690 = vmatprep.subr.mxu0 0.0
    %691 = vmatpush1.xpose.msra.mxu0 0.0
    %692 = vmatprep.subr.mxu0 0.0
    %693 = vmatpush1.xpose.msra.mxu0 0.0
    %694 = vmatprep.subr.mxu0 0.0
    %695 = vmatpush1.xpose.msra.mxu0 0.0
    %696 = vmatprep.subr.mxu0 0.0
    %697 = vmatpush1.xpose.msra.mxu0 0.0
    %698 = vmatprep.subr.mxu0 0.0
    %699 = vmatpush1.xpose.msra.mxu0 0.0
    %700 = vmatprep.subr.mxu0 0.0
    %701 = vmatpush1.xpose.msra.mxu0 0.0
    %702 = vmatprep.subr.mxu0 0.0
    %703 = vmatpush1.xpose.msra.mxu0 0.0
    %704 = vmatprep.subr.mxu0 0.0
    %705 = vmatpush1.xpose.msra.mxu0 0.0
    %706 = vmatprep.subr.mxu0 0.0
    %707 = vmatpush1.xpose.msra.mxu0 0.0
    %708 = vmatprep.subr.mxu0 0.0
    %709 = vmatpush1.xpose.msra.mxu0 0.0
    %710 = vmatprep.subr.mxu0 0.0
    %711 = vmatpush1.xpose.msra.mxu0 0.0
    %712 = vmatprep.subr.mxu0 0.0
    %713 = vmatpush1.xpose.msra.mxu0 0.0
    %714 = vmatprep.subr.mxu0 0.0
    %715 = vmatpush1.xpose.msra.mxu0 0.0
    %716 = vmatprep.mubr.f32.mxu0 0.0
    %v717 = vand.u32 %v148, 4294901760
    %718 = vmatmul.mubr.f32.gmra.mrb[0].mxu0 %v717
    %v719 = vpop.f32.mrb[0].mxu0
    %v720 = vadd.f32 %v601, %v719
    %v721 = vpop.f32.mrb[0].mxu0
    %722 = vdwg.mxu0
    %723 = vmatprep.subr.mxu0 0.0
    %v724 = vand.u32 %v153, 4294901760
    %725 = vmatpush1.xpose.msra.mxu0 %v724
    %726 = vmatprep.subr.mxu0 0.0
    %v727 = vand.u32 %v154, 4294901760
    %728 = vmatpush1.xpose.msra.mxu0 %v727
    %729 = vmatprep.subr.mxu0 0.0
    %v730 = vand.u32 %v155, 4294901760
    %731 = vmatpush1.xpose.msra.mxu0 %v730
    %732 = vmatprep.subr.mxu0 0.0
    %v733 = vand.u32 %v156, 4294901760
    %734 = vmatpush1.xpose.msra.mxu0 %v733
    %735 = vmatprep.subr.mxu0 0.0
    %v736 = vand.u32 %v157, 4294901760
    %737 = vmatpush1.xpose.msra.mxu0 %v736
    %738 = vmatprep.subr.mxu0 0.0
    %v739 = vand.u32 %v158, 4294901760
    %740 = vmatpush1.xpose.msra.mxu0 %v739
    %741 = vmatprep.subr.mxu0 0.0
    %v742 = vand.u32 %v159, 4294901760
    %743 = vmatpush1.xpose.msra.mxu0 %v742
    %744 = vmatprep.subr.mxu0 0.0
    %v745 = vand.u32 %v160, 4294901760
    %746 = vmatpush1.xpose.msra.mxu0 %v745
    %747 = vmatprep.subr.mxu0 0.0
    %v748 = vand.u32 %v161, 4294901760
    %749 = vmatpush1.xpose.msra.mxu0 %v748
    %750 = vmatprep.subr.mxu0 0.0
    %v751 = vand.u32 %v162, 4294901760
    %752 = vmatpush1.xpose.msra.mxu0 %v751
    %753 = vmatprep.subr.mxu0 0.0
    %v754 = vand.u32 %v163, 4294901760
    %755 = vmatpush1.xpose.msra.mxu0 %v754
    %756 = vmatprep.subr.mxu0 0.0
    %v757 = vand.u32 %v164, 4294901760
    %758 = vmatpush1.xpose.msra.mxu0 %v757
    %759 = vmatprep.subr.mxu0 0.0
    %v760 = vand.u32 %v165, 4294901760
    %761 = vmatpush1.xpose.msra.mxu0 %v760
    %762 = vmatprep.subr.mxu0 0.0
    %v763 = vand.u32 %v166, 4294901760
    %764 = vmatpush1.xpose.msra.mxu0 %v763
    %765 = vmatprep.subr.mxu0 0.0
    %v766 = vand.u32 %v167, 4294901760
    %767 = vmatpush1.xpose.msra.mxu0 %v766
    %768 = vmatprep.subr.mxu0 0.0
    %v769 = vand.u32 %v168, 4294901760
    %770 = vmatpush1.xpose.msra.mxu0 %v769
    %771 = vmatprep.subr.mxu0 0.0
    %772 = vmatpush1.xpose.msra.mxu0 0.0
    %773 = vmatprep.subr.mxu0 0.0
    %774 = vmatpush1.xpose.msra.mxu0 0.0
    %775 = vmatprep.subr.mxu0 0.0
    %776 = vmatpush1.xpose.msra.mxu0 0.0
    %777 = vmatprep.subr.mxu0 0.0
    %778 = vmatpush1.xpose.msra.mxu0 0.0
    %779 = vmatprep.subr.mxu0 0.0
    %780 = vmatpush1.xpose.msra.mxu0 0.0
    %781 = vmatprep.subr.mxu0 0.0
    %782 = vmatpush1.xpose.msra.mxu0 0.0
    %783 = vmatprep.subr.mxu0 0.0
    %784 = vmatpush1.xpose.msra.mxu0 0.0
    %785 = vmatprep.subr.mxu0 0.0
    %786 = vmatpush1.xpose.msra.mxu0 0.0
    %787 = vmatprep.subr.mxu0 0.0
    %788 = vmatpush1.xpose.msra.mxu0 0.0
    %789 = vmatprep.subr.mxu0 0.0
    %790 = vmatpush1.xpose.msra.mxu0 0.0
    %791 = vmatprep.subr.mxu0 0.0
    %792 = vmatpush1.xpose.msra.mxu0 0.0
    %793 = vmatprep.subr.mxu0 0.0
    %794 = vmatpush1.xpose.msra.mxu0 0.0
    %795 = vmatprep.subr.mxu0 0.0
    %796 = vmatpush1.xpose.msra.mxu0 0.0
    %797 = vmatprep.subr.mxu0 0.0
    %798 = vmatpush1.xpose.msra.mxu0 0.0
    %799 = vmatprep.subr.mxu0 0.0
    %800 = vmatpush1.xpose.msra.mxu0 0.0
    %801 = vmatprep.subr.mxu0 0.0
    %802 = vmatpush1.xpose.msra.mxu0 0.0
    %803 = vmatprep.mubr.f32.mxu0 0.0
    %v804 = vand.u32 %v148, 4294901760
    %805 = vmatmul.mubr.f32.gmra.mrb[0].mxu0 %v804
    %v806 = vpop.f32.mrb[0].mxu0
    %v807 = vadd.f32 %v720, %v806
    %v808 = vpop.f32.mrb[0].mxu0
    %809 = vdwg.mxu0
    %v810 = vmul.f32 %v807, %v152
    %v811 = vlaneseq
    %v812 = vand.u32 %v811, 127
    %v813 = vld [vmem:[%s2] sm:$0xff]
    %s814 = smul.u32 0, 128
    %v815 = vstv %s814
    %v816 = vsub.s32 %v813, %v815
    %817 = vset.pattern.permute.xlu0 0
    %818 = vperm.xlu0 %817, %v816
    %v819 = vpop.permute.xlu0 %818
    %vm820 = vcmp.eq.s32.totalorder %v812, %v819
    %v821 = vsub.f32 %v810, 0.9
    %v822 = vsel %vm820, %v821, %v810
    %v823 = vmul.f32 %v822, 20.0
    %824 = vst [vmem:[#allocation6] sm:$0xff] %v810
    %825 = vst [vmem:[#allocation7] sm:$0xff] %v823
    // Predicated region
    $region22: #{tpu_custom_call.1} parent=1 // pred_check
      _
    $region23: #{tpu_custom_call.1} parent=1 // pred_check_branch
      %827 = sbr.rel (0) target = $region25
    $region24: #{tpu_custom_call.1} parent=1 // pred_region
      %s829 = ssub.s32 128, 128
      %830 = vsyncadd [#allocation5], %s829
      %s832 = sshll.u32 [#allocation6], 4
      %s833 = int_to_ptr.vmem [resolvable:$true] %s832
      %835 = dma.vmem_to_hbm [thread:$0]  %s833, 128, %s3, [#allocation5]
    $region25: #{tpu_custom_call.1} parent=1 // pred_fallthru
      _
    // Predicated region
    $region26: #{tpu_custom_call.1} parent=1 // pred_check
      _
    $region27: #{tpu_custom_call.1} parent=1 // pred_check_branch
      %837 = sbr.rel (0) target = $region29
    $region28: #{tpu_custom_call.1} parent=1 // pred_region
      %s839 = ssub.s32 128, 128
      %840 = vsyncadd [#allocation8], %s839
      %s842 = sshll.u32 [#allocation7], 4
      %s843 = int_to_ptr.vmem [resolvable:$true] %s842
      %845 = dma.vmem_to_hbm [thread:$0]  %s843, 128, %s4, [#allocation8]
    $region29: #{tpu_custom_call.1} parent=1 // pred_fallthru
      _
    // Predicated region
    $region30: #{tpu_custom_call.1} parent=1 // pred_check
      _
    $region31: #{tpu_custom_call.1} parent=1 // pred_check_branch
      %847 = sbr.rel (0) target = $region33
    $region32: #{tpu_custom_call.1} parent=1 // pred_region
      %848 = dma.done [#allocation5], 128
    $region33: #{tpu_custom_call.1} parent=1 // pred_fallthru
      _
    // Predicated region
    $region34: #{tpu_custom_call.1} parent=1 // pred_check
      _
    $region35: #{tpu_custom_call.1} parent=1 // pred_check_branch
      %850 = sbr.rel (0) target = $region37
    $region36: #{tpu_custom_call.1} parent=1 // pred_region
      %851 = dma.done [#allocation8], 128
    $region37: #{tpu_custom_call.1} parent=1 // pred_fallthru
      _
    %852 = vsyncpa [#allocation4], 1
    %853 = vsyncpa [#allocation5], 1
    %854 = vsyncpa [#allocation8], 1

</llo_original>
